<compile_context>
chip_gen: v7x
topology: tpu7x:2x2x1
jax: 0.10.0
libtpu: 0.0.40
codegen_flags: <defaults>
</compile_context>

<pallas_src>
import functools

import jax
import jax.numpy as jnp
from jax.experimental import pallas as pl
from jax.experimental.pallas import tpu as pltpu


def _round_up(x, m):
    return ((x + m - 1) // m) * m


def _fused_heads_kernel(*refs, head_slices, with_actions, mode_pad, stats_pad):
    """All masked-categorical heads in one body.

    Inputs : x [Bb,Hp] bf16, w [Hp,At] bf16, b [1,At] f32, mask [Bb,At] int8,
             (actions [Bb,nh] int32 when with_actions).
    Outputs: modes [Bb,mode_pad] int32 (head h in column h),
             stats [Bb,stats_pad] f32 with columns [logp_mode... | entropy...
             | logp_action...]; both padded to 128 lanes (unmasked stores).
    """
    if with_actions:
        (x_ref, w_ref, b_ref, mask_ref, act_ref, mode_ref, stats_ref) = refs
    else:
        (x_ref, w_ref, b_ref, mask_ref, mode_ref, stats_ref) = refs

    num_heads = len(head_slices)
    bb = x_ref.shape[0]

    x = x_ref[...]                         # bf16 [Bb, Hp]
    w = w_ref[...]                         # bf16 [Hp, At]
    b = b_ref[...]                         # f32  [1, At]
    mask = mask_ref[...]                   # int8 [Bb, At]

    # One wide MXU matmul for all heads, f32 accumulation.
    logits = jnp.dot(x, w, preferred_element_type=jnp.float32) + b
    masked_all = jnp.where(mask != 0, logits, jnp.float32(-1e9))

    if with_actions:
        act_all = act_ref[...]             # [Bb, nh] int32, loaded once

    mode_out = jnp.zeros((bb, mode_pad), jnp.int32)
    stats_out = jnp.zeros((bb, stats_pad), jnp.float32)
    mode_col = jax.lax.broadcasted_iota(jnp.int32, (bb, mode_pad), 1)
    stat_col = jax.lax.broadcasted_iota(jnp.int32, (bb, stats_pad), 1)

    for h, (start, width, a_real) in enumerate(head_slices):
        masked = masked_all[:, start:start + width]        # lane-aligned slice
        lane = jax.lax.broadcasted_iota(jnp.int32, (bb, width), 1)
        lane_valid = lane < a_real                          # static per head

        mx = jnp.max(masked, axis=-1, keepdims=True)        # [Bb,1]
        z = masked - mx
        # Padded lanes never contribute, so a row whose real actions are all
        # masked still normalises over exactly a_real lanes (torch behaviour).
        ez = jnp.where(lane_valid, jnp.exp(z), 0.0)
        denom = jnp.sum(ez, axis=-1, keepdims=True)         # [Bb,1] >= 1
        log_denom = jnp.log(denom)
        inv_denom = pl.reciprocal(denom, approx=True)       # EUP slot, not VPU div

        # log_prob(mode): masked[mode] == mx  =>  logp(mode) = -log_denom.
        logp_mode = -log_denom
        # Entropy without materializing p over [Bb, A]:
        #   H = log_denom - sum(ez*z)/denom.
        entropy = log_denom - jnp.sum(ez * z, axis=-1, keepdims=True) * inv_denom
        # Mode = first argmax among real lanes (matches torch tie-break).
        mode = jnp.min(
            jnp.where((masked == mx) & lane_valid, lane, jnp.int32(width)),
            axis=-1, keepdims=True)                          # [Bb,1] int32

        # Scatter per-row scalars into the lane-dense output slabs (nh tiny,
        # so these selects are noise next to the mask stream / matmul).
        mode_out = jnp.where(mode_col == h, mode, mode_out)
        stats_out = jnp.where(stat_col == h, logp_mode, stats_out)
        stats_out = jnp.where(stat_col == num_heads + h, entropy, stats_out)

        if with_actions:
            act = act_all[:, h:h + 1]                        # [Bb,1] int32
            picked = jnp.sum(jnp.where(lane == act, masked, 0.0),
                             axis=-1, keepdims=True)
            logp_act = picked - mx - log_denom
            stats_out = jnp.where(stat_col == 2 * num_heads + h,
                                  logp_act, stats_out)

    mode_ref[...] = mode_out
    stats_ref[...] = stats_out


def fused_masked_heads(x, w_cat, b_cat, mask_cat, head_slices, actions=None):
    """Single pallas_call evaluating every masked-categorical head.

    Returns (modes [B,nh] int32, logp_mode [B,nh] f32, entropy [B,nh] f32,
             logp_actions [B,nh] f32 or None).
    """
    batch, hidden_p = x.shape
    a_tot = w_cat.shape[1]
    num_heads = len(head_slices)
    with_actions = actions is not None
    n_stats = 3 if with_actions else 2

    # int8 mask tiles need a 32-row sublane multiple (bf16 x needs 16); go up
    # to 256 rows to fill the 256-wide v6e/v7x MXU and amortise grid overhead.
    block_b = min(256, _round_up(batch, 32))
    b_pad = _round_up(batch, block_b)
    if b_pad != batch:
        pad = b_pad - batch
        x = jnp.pad(x, ((0, pad), (0, 0)))
        mask_cat = jnp.pad(mask_cat, ((0, pad), (0, 0)), constant_values=1)
        if with_actions:
            actions = jnp.pad(actions, ((0, pad), (0, 0)))
    grid = (b_pad // block_b,)

    # Lane-dense (>=128-wide) outputs -> unmasked vst; wrapper slices them.
    mode_pad = _round_up(num_heads, 128)
    stats_pad = _round_up(n_stats * num_heads, 128)

    # Weights/bias keep the same block index across all batch tiles -> stay
    # VMEM-resident (no re-DMA).
    # TODO(synk): single-buffer the block-invariant W/b specs with
    # pipeline_mode=pl.Buffered(1) once validated on this jax version; halves
    # their VMEM footprint, which matters on v7x's 64 MiB as lstm_dim*A_tot
    # grows. For very large lstm_dim*A_tot also add a K/A tiling grid axis.
    in_specs = [
        pl.BlockSpec((block_b, hidden_p), lambda i: (i, 0)),   # x  (batch-tiled)
        pl.BlockSpec((hidden_p, a_tot), lambda i: (0, 0)),     # W  (resident)
        pl.BlockSpec((1, a_tot), lambda i: (0, 0)),            # b  (resident)
        pl.BlockSpec((block_b, a_tot), lambda i: (i, 0)),      # mask int8
    ]
    args = [x, w_cat, b_cat, mask_cat]
    if with_actions:
        in_specs.append(pl.BlockSpec((block_b, num_heads), lambda i: (i, 0)))
        args.append(actions.astype(jnp.int32))

    out_shape = (
        jax.ShapeDtypeStruct((b_pad, mode_pad), jnp.int32),
        jax.ShapeDtypeStruct((b_pad, stats_pad), jnp.float32),
    )
    out_specs = [
        pl.BlockSpec((block_b, mode_pad), lambda i: (i, 0)),
        pl.BlockSpec((block_b, stats_pad), lambda i: (i, 0)),
    ]

    # Explicit VMEM budget: double-buffered x/mask/outputs, resident W/b, and
    # an f32 working-set allowance.  Floors the 16/32 MiB scoped defaults on
    # v5e/v7x; capped at v7x's 64 MiB physical VMEM.
    need = (2 * block_b * hidden_p * 2           # x bf16, 2 buffers
            + 2 * block_b * a_tot * 1            # mask int8, 2 buffers
            + 2 * hidden_p * a_tot * 2           # W bf16 (2 bufs until Buffered(1))
            + 2 * a_tot * 4                      # bias
            + 2 * block_b * (mode_pad + stats_pad) * 4
            + 8 * block_b * a_tot * 4)           # f32 logits/exp working set
    vmem_limit = int(min(max(2 * need, 32 * 1024 * 1024), 64 * 1024 * 1024))

    kernel = functools.partial(
        _fused_heads_kernel, head_slices=tuple(head_slices),
        with_actions=with_actions, mode_pad=mode_pad, stats_pad=stats_pad)

    modes, stats = pl.pallas_call(
        kernel,
        out_shape=out_shape,
        grid_spec=pltpu.PrefetchScalarGridSpec(
            num_scalar_prefetch=0,
            grid=grid,
            in_specs=in_specs,
            out_specs=out_specs,
        ),
        compiler_params=pltpu.CompilerParams(
            # TODO(synk): switch the batch axis to pltpu.CORE_PARALLEL (or a
            # pl.core_map 2-core mesh) on v7x once batch is large enough to
            # feed both TensorCores; plain "parallel" is near-neutral there.
            dimension_semantics=("parallel",),
            vmem_limit_bytes=vmem_limit),
    )(*args)

    modes = modes[:batch, :num_heads]
    stats = stats[:batch, :n_stats * num_heads]
    logp_mode = stats[:, :num_heads]
    entropy = stats[:, num_heads:2 * num_heads]
    logp_act = stats[:, 2 * num_heads:] if with_actions else None
    return modes, logp_mode, entropy, logp_act


class MultiActionHeadsGeneralisedPallas:
    """JAX/Pallas port of MultiActionHeadsGeneralised (fused-head forward)."""

    def __init__(self, head_params, autoregressive_map, lstm_dim,
                 log_prob_masks=None, type_conditional_action_masks=None):
        # head_params: list of (W_i [lstm_dim, A_i], b_i [1, A_i]).
        self.autoregressive_map = autoregressive_map
        self.lstm_dim = lstm_dim
        self.log_prob_masks = log_prob_masks   # not used by the reference forward
        self.num_heads = len(head_params)
        self.action_dims = [int(w.shape[1]) for w, _ in head_params]

        # Lane-align everything once: hidden padded to a 128 multiple (fills
        # the MXU K dim), every head's action axis padded to a 128 multiple so
        # the fused matmul and per-head slices stay vreg-aligned.
        self.hidden_pad = _round_up(lstm_dim, 128)
        self.pad_dims = [_round_up(a, 128) for a in self.action_dims]
        offsets, off = [], 0
        for ap in self.pad_dims:
            offsets.append(off)
            off += ap
        self.total_pad = off
        self.head_slices = tuple(
            (o, ap, a)
            for o, ap, a in zip(offsets, self.pad_dims, self.action_dims))

        w_cols, b_cols = [], []
        for (w, b), a, ap in zip(head_params, self.action_dims, self.pad_dims):
            w = jnp.asarray(w, jnp.float32)
            b = jnp.asarray(b, jnp.float32).reshape(1, a)
            w = jnp.pad(w, ((0, self.hidden_pad - lstm_dim), (0, ap - a)))
            w_cols.append(w)
            b_cols.append(jnp.pad(b, ((0, 0), (0, ap - a))))
        # bf16 weights halve HBM->VMEM weight bytes; MXU accumulates in f32.
        self.w_cat = jnp.concatenate(w_cols, axis=1).astype(jnp.bfloat16)
        self.b_cat = jnp.concatenate(b_cols, axis=1)

        if type_conditional_action_masks is not None:
            tc_cols = []
            for tc, a, ap in zip(type_conditional_action_masks,
                                 self.action_dims, self.pad_dims):
                if tc is None:
                    tc_cols.append(jnp.zeros((ap,), jnp.bool_))
                else:
                    tc_cols.append(jnp.pad(jnp.asarray(tc, jnp.bool_),
                                           (0, ap - a)))
            self.tc_cat = jnp.concatenate(tc_cols)[None, :]    # [1, total_pad]
        else:
            self.tc_cat = None

        # One jitted program: mask glue + fused Pallas call.
        self._jit_impl = jax.jit(self._impl)

    def _impl(self, main_input, masks, cond, actions, w_cat, b_cat, tc_cat):
        batch = main_input.shape[0]

        # ---- mask glue (mirrors the torch indexing), emitted directly in
        # int8 so the [B, A_tot] stream the kernel re-reads is 4x narrower
        # than f32.  TODO(synk): push the per-row type gather into the kernel
        # (scalar-prefetched cond) to drop the HBM round trip entirely.
        cols = []
        for i, (a, ap) in enumerate(zip(self.action_dims, self.pad_dims)):
            if masks is None:
                m = jnp.ones((batch, a), jnp.int8)
            else:
                m = masks[i]
                if cond is not None:
                    # masks_[arange(B), condition_on_action_type]
                    m = m[jnp.arange(batch), cond]
                m = (m != 0).astype(jnp.int8)
            cols.append(jnp.pad(m, ((0, 0), (0, ap - a))))     # pad lanes -> 0
        mask_cat = jnp.concatenate(cols, axis=1)
        if tc_cat is not None:
            # masked_fill(type_conditional_action_masks[i], 0)
            mask_cat = jnp.where(tc_cat, jnp.int8(0), mask_cat)

        act_arr = None
        if actions is not None:
            act_arr = jnp.stack(
                [jnp.asarray(a).reshape(batch) for a in actions],
                axis=1).astype(jnp.int32)

        x = main_input.astype(jnp.bfloat16)
        if self.hidden_pad != self.lstm_dim:
            x = jnp.pad(x, ((0, 0), (0, self.hidden_pad - self.lstm_dim)))
        return fused_masked_heads(x, w_cat, b_cat, mask_cat,
                                  self.head_slices, actions=act_arr)

    def forward(self, main_input, masks=None, custom_inputs=None,
                deterministic=False, condition_on_action_type=None,
                log_specific_head_probs=False, actions=None):
        # `deterministic` never changes the reference forward's returned
        # mode/log_probs/entropy, so it is ignored.
        # TODO(synk): custom_inputs / autoregressive_map conditioning is not
        # exercised by the reference forward loop and is not modelled here.
        del custom_inputs, deterministic

        masks_t = tuple(masks) if masks is not None else None
        actions_t = tuple(actions) if actions is not None else None

        modes, logp_mode, entropy_all, logp_act = self._jit_impl(
            main_input, masks_t, condition_on_action_type, actions_t,
            self.w_cat, self.b_cat, self.tc_cat)

        last = self.num_heads - 1
        mode = modes[:, last:last + 1]
        entropy = entropy_all[:, last:last + 1]
        if actions is not None:
            log_probs = logp_act[:, last:last + 1]
        else:
            log_probs = logp_mode[:, last:last + 1]

        log_output = None
        if log_specific_head_probs:
            log_output = {i: logp_mode[:, i:i + 1]
                          for i in range(self.num_heads)}
        return mode, log_probs, entropy, log_output


if __name__ == "__main__":
    key = jax.random.PRNGKey(0)

    batch = 4
    lstm_dim = 64
    num_types = 3
    action_dims = [12, 20, 32]          # one categorical head per entry

    keys = jax.random.split(key, 2 + 3 * len(action_dims))
    main_input = jax.random.normal(keys[0], (batch, lstm_dim), jnp.float32)
    condition_on_action_type = jax.random.randint(
        keys[1], (batch,), 0, num_types)

    head_params = []
    masks = []
    type_cond_masks = []
    for i, a in enumerate(action_dims):
        kw, kb, km = keys[2 + 3 * i: 5 + 3 * i]
        w = jax.random.normal(kw, (lstm_dim, a), jnp.float32) * 0.1
        b = jax.random.normal(kb, (1, a), jnp.float32) * 0.1
        head_params.append((w, b))
        # per-head mask indexed by action type: [B, num_types, A_i], mostly 1s
        m = (jax.random.uniform(km, (batch, num_types, a)) > 0.2).astype(
            jnp.float32)
        m = m.at[:, :, 0].set(1.0)          # action 0 always legal
        masks.append(m)
        # disallow the last action of every head unconditionally
        tc = jnp.zeros((a,), bool).at[-1].set(True)
        type_cond_masks.append(tc)

    module = MultiActionHeadsGeneralisedPallas(
        head_params,
        autoregressive_map=None,
        lstm_dim=lstm_dim,
        type_conditional_action_masks=type_cond_masks,
    )

    mode, log_probs, entropy, log_output = module.forward(
        main_input,
        masks=masks,
        condition_on_action_type=condition_on_action_type,
        log_specific_head_probs=True,
    )

    jax.block_until_ready((mode, log_probs, entropy,
                           tuple(log_output.values())))

    assert mode.shape == (batch, 1) and mode.dtype == jnp.int32
    assert log_probs.shape == (batch, 1)
    assert entropy.shape == (batch, 1)
    assert len(log_output) == len(action_dims)
    assert bool(jnp.all(jnp.isfinite(log_probs)))
    assert bool(jnp.all(entropy >= 0.0))
    # mode must be a real (non-padded) action index of the last head
    assert bool(jnp.all((mode >= 0) & (mode < action_dims[-1])))

    print("KERNEL_OK")
</pallas_src>

<mosaic_0001>
module attributes {stable_mosaic.version = 11 : i64} {
  func.func @_fused_heads_kernel(%arg0: i32, %arg1: memref<32x128xbf16, #tpu.memory_space<vmem>>, %arg2: memref<128x384xbf16, #tpu.memory_space<vmem>>, %arg3: memref<1x384xf32, #tpu.memory_space<vmem>>, %arg4: memref<32x384xi8, #tpu.memory_space<vmem>>, %arg5: memref<32x128xi32, #tpu.memory_space<vmem>>, %arg6: memref<32x128xf32, #tpu.memory_space<vmem>>) attributes {dimension_semantics = [#tpu.dimension_semantics<parallel>], iteration_bounds = array<i64: 1>, scalar_prefetch = 0 : i64, scratch_operands = 0 : i64, tpu.core_type = #tpu.core_type<tc>, window_params = [{transform_indices = @transform_0, window_bounds = array<i64: 32, 128>}, {pipeline_mode = #tpu.pipeline_mode<synchronous>, transform_indices = @transform_1, window_bounds = array<i64: 128, 384>}, {pipeline_mode = #tpu.pipeline_mode<synchronous>, transform_indices = @transform_2, window_bounds = array<i64: 1, 384>}, {transform_indices = @transform_3, window_bounds = array<i64: 32, 384>}, {transform_indices = @transform_4, window_bounds = array<i64: 32, 128>}, {transform_indices = @transform_5, window_bounds = array<i64: 32, 128>}]} {
    %c0 = arith.constant 0 : index
    %c0_0 = arith.constant 0 : index
    %0 = vector.load %arg1[%c0, %c0_0] : memref<32x128xbf16, #tpu.memory_space<vmem>>, vector<32x128xbf16>
    %c0_1 = arith.constant 0 : index
    %c0_2 = arith.constant 0 : index
    %1 = vector.load %arg2[%c0_1, %c0_2] : memref<128x384xbf16, #tpu.memory_space<vmem>>, vector<128x384xbf16>
    %c0_3 = arith.constant 0 : index
    %c0_4 = arith.constant 0 : index
    %2 = vector.load %arg3[%c0_3, %c0_4] : memref<1x384xf32, #tpu.memory_space<vmem>>, vector<1x384xf32>
    %c0_5 = arith.constant 0 : index
    %c0_6 = arith.constant 0 : index
    %3 = vector.load %arg4[%c0_5, %c0_6] : memref<32x384xi8, #tpu.memory_space<vmem>>, vector<32x384xi8>
    %cst = arith.constant dense<0.000000e+00> : vector<32x384xf32>
    %4 = tpu.matmul %0, %1, %cst {dimension_numbers = #tpu.dot_dimension_numbers<[1], [0], [0], [1], [0, 0, 1, 1], [], []>} : vector<32x128xbf16>, vector<128x384xbf16>, vector<32x384xf32> -> vector<32x384xf32>
    %5 = vector.broadcast %2 : vector<1x384xf32> to vector<32x384xf32>
    %6 = arith.addf %4, %5 : vector<32x384xf32>
    %c0_i8 = arith.constant 0 : i8
    %7 = vector.broadcast %c0_i8 : i8 to vector<32x384xi8>
    %8 = arith.cmpi ne, %3, %7 : vector<32x384xi8>
    %cst_7 = arith.constant -1.000000e+09 : f32
    %9 = vector.broadcast %cst_7 : f32 to vector<32x384xf32>
    %10 = arith.select %8, %6, %9 : vector<32x384xi1>, vector<32x384xf32>
    %c0_i32 = arith.constant 0 : i32
    %11 = vector.broadcast %c0_i32 : i32 to vector<32x128xi32>
    %cst_8 = arith.constant 0.000000e+00 : f32
    %12 = vector.broadcast %cst_8 : f32 to vector<32x128xf32>
    %13 = tpu.iota {dimensions = array<i32: 1>} : vector<32x128xi32>
    %14 = tpu.iota {dimensions = array<i32: 1>} : vector<32x128xi32>
    %15 = vector.extract_strided_slice %10 {offsets = [0, 0], sizes = [32, 128], strides = [1, 1]} : vector<32x384xf32> to vector<32x128xf32>
    %16 = tpu.iota {dimensions = array<i32: 1>} : vector<32x128xi32>
    %c12_i32 = arith.constant 12 : i32
    %17 = vector.broadcast %c12_i32 : i32 to vector<32x128xi32>
    %18 = arith.cmpi slt, %16, %17 : vector<32x128xi32>
    %cst_9 = arith.constant dense<0xFF800000> : vector<32xf32>
    %19 = vector.multi_reduction <maximumf>, %15, %cst_9 [1] : vector<32x128xf32> to vector<32xf32>
    %20 = vector.shape_cast %19 : vector<32xf32> to vector<32x1xf32>
    %21 = vector.broadcast %20 : vector<32x1xf32> to vector<32x128xf32>
    %22 = arith.subf %15, %21 : vector<32x128xf32>
    %23 = math.exp %22 : vector<32x128xf32>
    %cst_10 = arith.constant 0.000000e+00 : f32
    %24 = vector.broadcast %cst_10 : f32 to vector<32x128xf32>
    %25 = arith.select %18, %23, %24 : vector<32x128xi1>, vector<32x128xf32>
    %cst_11 = arith.constant dense<0.000000e+00> : vector<32xf32>
    %26 = vector.multi_reduction <add>, %25, %cst_11 [1] : vector<32x128xf32> to vector<32xf32>
    %27 = vector.shape_cast %26 : vector<32xf32> to vector<32x1xf32>
    %28 = math.log %27 : vector<32x1xf32>
    %29 = tpu.reciprocal %27 {approx = true} : vector<32x1xf32> -> vector<32x1xf32>
    %cst_12 = arith.constant 0.000000e+00 : f32
    %30 = vector.broadcast %cst_12 : f32 to vector<32x1xf32>
    %31 = arith.subf %30, %28 : vector<32x1xf32>
    %32 = arith.mulf %25, %22 : vector<32x128xf32>
    %cst_13 = arith.constant dense<0.000000e+00> : vector<32xf32>
    %33 = vector.multi_reduction <add>, %32, %cst_13 [1] : vector<32x128xf32> to vector<32xf32>
    %34 = vector.shape_cast %33 : vector<32xf32> to vector<32x1xf32>
    %35 = arith.mulf %34, %29 : vector<32x1xf32>
    %36 = arith.subf %28, %35 : vector<32x1xf32>
    %37 = vector.broadcast %20 : vector<32x1xf32> to vector<32x128xf32>
    %38 = arith.cmpf oeq, %15, %37 : vector<32x128xf32>
    %39 = arith.andi %38, %18 : vector<32x128xi1>
    %c128_i32 = arith.constant 128 : i32
    %40 = vector.broadcast %c128_i32 : i32 to vector<32x128xi32>
    %41 = arith.select %39, %16, %40 : vector<32x128xi1>, vector<32x128xi32>
    %cst_14 = arith.constant dense<2147483647> : vector<32xi32>
    %42 = vector.multi_reduction <minsi>, %41, %cst_14 [1] : vector<32x128xi32> to vector<32xi32>
    %43 = vector.shape_cast %42 : vector<32xi32> to vector<32x1xi32>
    %c0_i32_15 = arith.constant 0 : i32
    %44 = vector.broadcast %c0_i32_15 : i32 to vector<32x128xi32>
    %45 = arith.cmpi eq, %13, %44 : vector<32x128xi32>
    %46 = vector.shape_cast %43 : vector<32x1xi32> to vector<32x1xi32>
    %47 = vector.broadcast %46 : vector<32x1xi32> to vector<32x128xi32>
    %48 = arith.select %45, %47, %11 : vector<32x128xi1>, vector<32x128xi32>
    %c0_i32_16 = arith.constant 0 : i32
    %49 = vector.broadcast %c0_i32_16 : i32 to vector<32x128xi32>
    %50 = arith.cmpi eq, %14, %49 : vector<32x128xi32>
    %51 = vector.shape_cast %31 : vector<32x1xf32> to vector<32x1xf32>
    %52 = vector.broadcast %51 : vector<32x1xf32> to vector<32x128xf32>
    %53 = arith.select %50, %52, %12 : vector<32x128xi1>, vector<32x128xf32>
    %c3_i32 = arith.constant 3 : i32
    %54 = vector.broadcast %c3_i32 : i32 to vector<32x128xi32>
    %55 = arith.cmpi eq, %14, %54 : vector<32x128xi32>
    %56 = vector.shape_cast %36 : vector<32x1xf32> to vector<32x1xf32>
    %57 = vector.broadcast %56 : vector<32x1xf32> to vector<32x128xf32>
    %58 = arith.select %55, %57, %53 : vector<32x128xi1>, vector<32x128xf32>
    %59 = vector.extract_strided_slice %10 {offsets = [0, 128], sizes = [32, 128], strides = [1, 1]} : vector<32x384xf32> to vector<32x128xf32>
    %60 = tpu.iota {dimensions = array<i32: 1>} : vector<32x128xi32>
    %c20_i32 = arith.constant 20 : i32
    %61 = vector.broadcast %c20_i32 : i32 to vector<32x128xi32>
    %62 = arith.cmpi slt, %60, %61 : vector<32x128xi32>
    %cst_17 = arith.constant dense<0xFF800000> : vector<32xf32>
    %63 = vector.multi_reduction <maximumf>, %59, %cst_17 [1] : vector<32x128xf32> to vector<32xf32>
    %64 = vector.shape_cast %63 : vector<32xf32> to vector<32x1xf32>
    %65 = vector.broadcast %64 : vector<32x1xf32> to vector<32x128xf32>
    %66 = arith.subf %59, %65 : vector<32x128xf32>
    %67 = math.exp %66 : vector<32x128xf32>
    %cst_18 = arith.constant 0.000000e+00 : f32
    %68 = vector.broadcast %cst_18 : f32 to vector<32x128xf32>
    %69 = arith.select %62, %67, %68 : vector<32x128xi1>, vector<32x128xf32>
    %cst_19 = arith.constant dense<0.000000e+00> : vector<32xf32>
    %70 = vector.multi_reduction <add>, %69, %cst_19 [1] : vector<32x128xf32> to vector<32xf32>
    %71 = vector.shape_cast %70 : vector<32xf32> to vector<32x1xf32>
    %72 = math.log %71 : vector<32x1xf32>
    %73 = tpu.reciprocal %71 {approx = true} : vector<32x1xf32> -> vector<32x1xf32>
    %cst_20 = arith.constant 0.000000e+00 : f32
    %74 = vector.broadcast %cst_20 : f32 to vector<32x1xf32>
    %75 = arith.subf %74, %72 : vector<32x1xf32>
    %76 = arith.mulf %69, %66 : vector<32x128xf32>
    %cst_21 = arith.constant dense<0.000000e+00> : vector<32xf32>
    %77 = vector.multi_reduction <add>, %76, %cst_21 [1] : vector<32x128xf32> to vector<32xf32>
    %78 = vector.shape_cast %77 : vector<32xf32> to vector<32x1xf32>
    %79 = arith.mulf %78, %73 : vector<32x1xf32>
    %80 = arith.subf %72, %79 : vector<32x1xf32>
    %81 = vector.broadcast %64 : vector<32x1xf32> to vector<32x128xf32>
    %82 = arith.cmpf oeq, %59, %81 : vector<32x128xf32>
    %83 = arith.andi %82, %62 : vector<32x128xi1>
    %c128_i32_22 = arith.constant 128 : i32
    %84 = vector.broadcast %c128_i32_22 : i32 to vector<32x128xi32>
    %85 = arith.select %83, %60, %84 : vector<32x128xi1>, vector<32x128xi32>
    %cst_23 = arith.constant dense<2147483647> : vector<32xi32>
    %86 = vector.multi_reduction <minsi>, %85, %cst_23 [1] : vector<32x128xi32> to vector<32xi32>
    %87 = vector.shape_cast %86 : vector<32xi32> to vector<32x1xi32>
    %c1_i32 = arith.constant 1 : i32
    %88 = vector.broadcast %c1_i32 : i32 to vector<32x128xi32>
    %89 = arith.cmpi eq, %13, %88 : vector<32x128xi32>
    %90 = vector.shape_cast %87 : vector<32x1xi32> to vector<32x1xi32>
    %91 = vector.broadcast %90 : vector<32x1xi32> to vector<32x128xi32>
    %92 = arith.select %89, %91, %48 : vector<32x128xi1>, vector<32x128xi32>
    %c1_i32_24 = arith.constant 1 : i32
    %93 = vector.broadcast %c1_i32_24 : i32 to vector<32x128xi32>
    %94 = arith.cmpi eq, %14, %93 : vector<32x128xi32>
    %95 = vector.shape_cast %75 : vector<32x1xf32> to vector<32x1xf32>
    %96 = vector.broadcast %95 : vector<32x1xf32> to vector<32x128xf32>
    %97 = arith.select %94, %96, %58 : vector<32x128xi1>, vector<32x128xf32>
    %c4_i32 = arith.constant 4 : i32
    %98 = vector.broadcast %c4_i32 : i32 to vector<32x128xi32>
    %99 = arith.cmpi eq, %14, %98 : vector<32x128xi32>
    %100 = vector.shape_cast %80 : vector<32x1xf32> to vector<32x1xf32>
    %101 = vector.broadcast %100 : vector<32x1xf32> to vector<32x128xf32>
    %102 = arith.select %99, %101, %97 : vector<32x128xi1>, vector<32x128xf32>
    %103 = vector.extract_strided_slice %10 {offsets = [0, 256], sizes = [32, 128], strides = [1, 1]} : vector<32x384xf32> to vector<32x128xf32>
    %104 = tpu.iota {dimensions = array<i32: 1>} : vector<32x128xi32>
    %c32_i32 = arith.constant 32 : i32
    %105 = vector.broadcast %c32_i32 : i32 to vector<32x128xi32>
    %106 = arith.cmpi slt, %104, %105 : vector<32x128xi32>
    %cst_25 = arith.constant dense<0xFF800000> : vector<32xf32>
    %107 = vector.multi_reduction <maximumf>, %103, %cst_25 [1] : vector<32x128xf32> to vector<32xf32>
    %108 = vector.shape_cast %107 : vector<32xf32> to vector<32x1xf32>
    %109 = vector.broadcast %108 : vector<32x1xf32> to vector<32x128xf32>
    %110 = arith.subf %103, %109 : vector<32x128xf32>
    %111 = math.exp %110 : vector<32x128xf32>
    %cst_26 = arith.constant 0.000000e+00 : f32
    %112 = vector.broadcast %cst_26 : f32 to vector<32x128xf32>
    %113 = arith.select %106, %111, %112 : vector<32x128xi1>, vector<32x128xf32>
    %cst_27 = arith.constant dense<0.000000e+00> : vector<32xf32>
    %114 = vector.multi_reduction <add>, %113, %cst_27 [1] : vector<32x128xf32> to vector<32xf32>
    %115 = vector.shape_cast %114 : vector<32xf32> to vector<32x1xf32>
    %116 = math.log %115 : vector<32x1xf32>
    %117 = tpu.reciprocal %115 {approx = true} : vector<32x1xf32> -> vector<32x1xf32>
    %cst_28 = arith.constant 0.000000e+00 : f32
    %118 = vector.broadcast %cst_28 : f32 to vector<32x1xf32>
    %119 = arith.subf %118, %116 : vector<32x1xf32>
    %120 = arith.mulf %113, %110 : vector<32x128xf32>
    %cst_29 = arith.constant dense<0.000000e+00> : vector<32xf32>
    %121 = vector.multi_reduction <add>, %120, %cst_29 [1] : vector<32x128xf32> to vector<32xf32>
    %122 = vector.shape_cast %121 : vector<32xf32> to vector<32x1xf32>
    %123 = arith.mulf %122, %117 : vector<32x1xf32>
    %124 = arith.subf %116, %123 : vector<32x1xf32>
    %125 = vector.broadcast %108 : vector<32x1xf32> to vector<32x128xf32>
    %126 = arith.cmpf oeq, %103, %125 : vector<32x128xf32>
    %127 = arith.andi %126, %106 : vector<32x128xi1>
    %c128_i32_30 = arith.constant 128 : i32
    %128 = vector.broadcast %c128_i32_30 : i32 to vector<32x128xi32>
    %129 = arith.select %127, %104, %128 : vector<32x128xi1>, vector<32x128xi32>
    %cst_31 = arith.constant dense<2147483647> : vector<32xi32>
    %130 = vector.multi_reduction <minsi>, %129, %cst_31 [1] : vector<32x128xi32> to vector<32xi32>
    %131 = vector.shape_cast %130 : vector<32xi32> to vector<32x1xi32>
    %c2_i32 = arith.constant 2 : i32
    %132 = vector.broadcast %c2_i32 : i32 to vector<32x128xi32>
    %133 = arith.cmpi eq, %13, %132 : vector<32x128xi32>
    %134 = vector.shape_cast %131 : vector<32x1xi32> to vector<32x1xi32>
    %135 = vector.broadcast %134 : vector<32x1xi32> to vector<32x128xi32>
    %136 = arith.select %133, %135, %92 : vector<32x128xi1>, vector<32x128xi32>
    %c2_i32_32 = arith.constant 2 : i32
    %137 = vector.broadcast %c2_i32_32 : i32 to vector<32x128xi32>
    %138 = arith.cmpi eq, %14, %137 : vector<32x128xi32>
    %139 = vector.shape_cast %119 : vector<32x1xf32> to vector<32x1xf32>
    %140 = vector.broadcast %139 : vector<32x1xf32> to vector<32x128xf32>
    %141 = arith.select %138, %140, %102 : vector<32x128xi1>, vector<32x128xf32>
    %c5_i32 = arith.constant 5 : i32
    %142 = vector.broadcast %c5_i32 : i32 to vector<32x128xi32>
    %143 = arith.cmpi eq, %14, %142 : vector<32x128xi32>
    %144 = vector.shape_cast %124 : vector<32x1xf32> to vector<32x1xf32>
    %145 = vector.broadcast %144 : vector<32x1xf32> to vector<32x128xf32>
    %146 = arith.select %143, %145, %141 : vector<32x128xi1>, vector<32x128xf32>
    %c0_33 = arith.constant 0 : index
    %c0_34 = arith.constant 0 : index
    %147 = vector.load %arg5[%c0_33, %c0_34] : memref<32x128xi32, #tpu.memory_space<vmem>>, vector<32x128xi32>
    tpu.vector_store %arg5[%c0_33, %c0_34], %136 {strides = array<i32>} : memref<32x128xi32, #tpu.memory_space<vmem>>, vector<32x128xi32>,
    %c0_35 = arith.constant 0 : index
    %c0_36 = arith.constant 0 : index
    %148 = vector.load %arg6[%c0_35, %c0_36] : memref<32x128xf32, #tpu.memory_space<vmem>>, vector<32x128xf32>
    tpu.vector_store %arg6[%c0_35, %c0_36], %146 {strides = array<i32>} : memref<32x128xf32, #tpu.memory_space<vmem>>, vector<32x128xf32>,
    return
  }
  func.func @transform_0(%arg0: i32) -> (i32, i32) {
    %c0_i32 = arith.constant 0 : i32
    %c0_i32_0 = arith.constant 0 : i32
    return %arg0, %c0_i32 : i32, i32
  }
  func.func @transform_1(%arg0: i32) -> (i32, i32) {
    %c0_i32 = arith.constant 0 : i32
    %c0_i32_0 = arith.constant 0 : i32
    %c0_i32_1 = arith.constant 0 : i32
    return %c0_i32, %c0_i32_0 : i32, i32
  }
  func.func @transform_2(%arg0: i32) -> (i32, i32) {
    %c0_i32 = arith.constant 0 : i32
    %c0_i32_0 = arith.constant 0 : i32
    %c0_i32_1 = arith.constant 0 : i32
    return %c0_i32, %c0_i32_0 : i32, i32
  }
  func.func @transform_3(%arg0: i32) -> (i32, i32) {
    %c0_i32 = arith.constant 0 : i32
    %c0_i32_0 = arith.constant 0 : i32
    return %arg0, %c0_i32 : i32, i32
  }
  func.func @transform_4(%arg0: i32) -> (i32, i32) {
    %c0_i32 = arith.constant 0 : i32
    %c0_i32_0 = arith.constant 0 : i32
    return %arg0, %c0_i32 : i32, i32
  }
  func.func @transform_5(%arg0: i32) -> (i32, i32) {
    %c0_i32 = arith.constant 0 : i32
    %c0_i32_0 = arith.constant 0 : i32
    return %arg0, %c0_i32 : i32, i32
  }
}

</mosaic_0001>

<llo_original>
// kernel: _impl.1
$region0: #{_impl.1}
  #allocation0 [shape = 'u32[]', space=smem, size = 0x4, offset = 0x4, fixed_abs, tag = 'smem constant byte address 0x4 - core index']
  #allocation1 [shape = 'u32[144,128]{1,0:T(1,128)}', space=vmem, size = 0x12000, scoped, tag = 'internal scratch']
  %s0 = inlined_call_operand.vmem [shape: bf16[32,128], index: 0, kind: input, shape index: {}]
  %s1 = inlined_call_operand.vmem [shape: bf16[128,384], index: 1, kind: input, shape index: {}]
  %s2 = inlined_call_operand.vmem [shape: f32[1,384], index: 2, kind: input, shape index: {}]
  %s3 = inlined_call_operand.vmem [shape: s8[32,384], index: 3, kind: input, shape index: {}]
  %s4 = inlined_call_operand.vmem [shape: s32[32,128], index: 4, kind: output, shape index: {0}]
  %s5 = inlined_call_operand.vmem [shape: f32[32,128], index: 5, kind: output, shape index: {1}]
  %6 = xla_tuple %s4, %s5
  %s7 = sld [smem:[#allocation0]]
  $region34: #{_impl.1} parent=0
    _
  %s9 = ssub.s32 1, %s7
  %s10 = scalar_select 0, %s9, %s7
  // Predicated region
  $region2: #{_impl.1} parent=0 // pred_check
    _
  $region3: #{_impl.1} parent=0 // pred_check_branch
    %12 = sbr.rel (0) target = $region5
  $region4: #{_impl.1} parent=0 // pred_region
    _
  $region5: #{_impl.1} parent=0 // pred_fallthru
    _
  // Predicated region
  $region6: #{_impl.1} parent=0 // pred_check
    _
  $region7: #{_impl.1} parent=0 // pred_check_branch
    %14 = sbr.rel (0) target = $region9
  $region8: #{_impl.1} parent=0 // pred_region
    _
  $region9: #{_impl.1} parent=0 // pred_fallthru
    _
  // Predicated region
  $region10: #{_impl.1} parent=0 // pred_check
    _
  $region11: #{_impl.1} parent=0 // pred_check_branch
    %16 = sbr.rel (0) target = $region13
  $region12: #{_impl.1} parent=0 // pred_region
    _
  $region13: #{_impl.1} parent=0 // pred_fallthru
    _
  // Predicated region
  $region14: #{_impl.1} parent=0 // pred_check
    _
  $region15: #{_impl.1} parent=0 // pred_check_branch
    %18 = sbr.rel (0) target = $region17
  $region16: #{_impl.1} parent=0 // pred_region
    _
  $region17: #{_impl.1} parent=0 // pred_fallthru
    _
  %v22 = vld [vmem:[%s0] sm:$0xf]
  %v23 = vld [vmem:[%s0 + $0x4] sm:$0xf]
  %v24 = vld [vmem:[%s0 + $0x8] sm:$0xf]
  %v25 = vld [vmem:[%s0 + $0xc] sm:$0xf]
  %v26 = vld [vmem:[%s1] sm:$0xff]
  %v27 = vld [vmem:[%s1 + $0x8] sm:$0xf]
  %v28 = vld [vmem:[%s1 + $0xc] sm:$0xff]
  %v29 = vld [vmem:[%s1 + $0x14] sm:$0xf]
  %v30 = vld [vmem:[%s1 + $0x18] sm:$0xff]
  %v31 = vld [vmem:[%s1 + $0x20] sm:$0xf]
  %v32 = vld [vmem:[%s1 + $0x24] sm:$0xff]
  %v33 = vld [vmem:[%s1 + $0x2c] sm:$0xf]
  %v34 = vld [vmem:[%s1 + $0x30] sm:$0xff]
  %v35 = vld [vmem:[%s1 + $0x38] sm:$0xf]
  %v36 = vld [vmem:[%s1 + $0x3c] sm:$0xff]
  %v37 = vld [vmem:[%s1 + $0x44] sm:$0xf]
  %v38 = vld [vmem:[%s1 + $0x48] sm:$0xff]
  %v39 = vld [vmem:[%s1 + $0x50] sm:$0xf]
  %v40 = vld [vmem:[%s1 + $0x54] sm:$0xff]
  %v41 = vld [vmem:[%s1 + $0x5c] sm:$0xf]
  %v42 = vld [vmem:[%s1 + $0x60] sm:$0xff]
  %v43 = vld [vmem:[%s1 + $0x68] sm:$0xf]
  %v44 = vld [vmem:[%s1 + $0x6c] sm:$0xff]
  %v45 = vld [vmem:[%s1 + $0x74] sm:$0xf]
  %v46 = vld [vmem:[%s1 + $0x78] sm:$0xff]
  %v47 = vld [vmem:[%s1 + $0x80] sm:$0xf]
  %v48 = vld [vmem:[%s1 + $0x84] sm:$0xff]
  %v49 = vld [vmem:[%s1 + $0x8c] sm:$0xf]
  %v50 = vld [vmem:[%s1 + $0x90] sm:$0xff]
  %v51 = vld [vmem:[%s1 + $0x98] sm:$0xf]
  %v52 = vld [vmem:[%s1 + $0x9c] sm:$0xff]
  %v53 = vld [vmem:[%s1 + $0xa4] sm:$0xf]
  %v54 = vld [vmem:[%s1 + $0xa8] sm:$0xff]
  %v55 = vld [vmem:[%s1 + $0xb0] sm:$0xf]
  %v56 = vld [vmem:[%s1 + $0xb4] sm:$0xff]
  %v57 = vld [vmem:[%s1 + $0xbc] sm:$0xf]
  %v58 = vld [vmem:[%s2] sm:$0x7]
  %v59 = vld [vmem:[%s3] sm:$0xff]
  %v60 = vld [vmem:[%s3 + $0x8] sm:$0xff]
  %v61 = vld [vmem:[%s3 + $0x10] sm:$0xff]
  %v63 = vlaneseq
  %v64 = vshrl.u32 %v63, 7
  %v65 = vsub.s32 0, %v64
  %v66 = vrot.slane %v58, %v65
  %v67 = vlaneseq
  %v68 = vshrl.u32 %v67, 7
  %v69 = vsub.s32 1, %v68
  %v70 = vrot.slane %v58, %v69
  %v71 = vlaneseq
  %v72 = vshrl.u32 %v71, 7
  %v73 = vsub.s32 2, %v72
  %v74 = vrot.slane %v58, %v73
  %v82 = vunpack.c.l.b16 %v22
  %v83 = vunpack.c.l.b16 %v23
  %v84 = vunpack.c.l.b16 %v24
  %v85 = vunpack.c.l.b16 %v25
  %v86 = vpack.c.b16 %v83, %v82
  %v87 = vpack.c.b16 %v85, %v84
  %v122 = vunpack.c.l.b16 %v26
  %v123 = vunpack.c.h.b16 %v26
  %v124 = vunpack.c.l.b16 %v27
  %v125 = vunpack.c.l.b16 %v28
  %v126 = vunpack.c.h.b16 %v28
  %v127 = vunpack.c.l.b16 %v29
  %v128 = vunpack.c.l.b16 %v30
  %v129 = vunpack.c.h.b16 %v30
  %v130 = vunpack.c.l.b16 %v31
  %v131 = vunpack.c.l.b16 %v32
  %v132 = vunpack.c.h.b16 %v32
  %v133 = vunpack.c.l.b16 %v33
  %v134 = vunpack.c.l.b16 %v34
  %v135 = vunpack.c.h.b16 %v34
  %v136 = vunpack.c.l.b16 %v35
  %v137 = vunpack.c.l.b16 %v36
  %v138 = vunpack.c.h.b16 %v36
  %v139 = vunpack.c.l.b16 %v37
  %v140 = vunpack.c.l.b16 %v38
  %v141 = vunpack.c.h.b16 %v38
  %v142 = vunpack.c.l.b16 %v39
  %v143 = vunpack.c.l.b16 %v40
  %v144 = vunpack.c.h.b16 %v40
  %v145 = vunpack.c.l.b16 %v41
  %v146 = vunpack.c.l.b16 %v42
  %v147 = vunpack.c.h.b16 %v42
  %v148 = vunpack.c.l.b16 %v43
  %v149 = vunpack.c.l.b16 %v44
  %v150 = vunpack.c.h.b16 %v44
  %v151 = vunpack.c.l.b16 %v45
  %v152 = vunpack.c.l.b16 %v46
  %v153 = vunpack.c.h.b16 %v46
  %v154 = vunpack.c.l.b16 %v47
  %v155 = vunpack.c.l.b16 %v48
  %v156 = vunpack.c.h.b16 %v48
  %v157 = vunpack.c.l.b16 %v49
  %v158 = vunpack.c.l.b16 %v50
  %v159 = vunpack.c.h.b16 %v50
  %v160 = vunpack.c.l.b16 %v51
  %v161 = vunpack.c.l.b16 %v52
  %v162 = vunpack.c.h.b16 %v52
  %v163 = vunpack.c.l.b16 %v53
  %v164 = vunpack.c.l.b16 %v54
  %v165 = vunpack.c.h.b16 %v54
  %v166 = vunpack.c.l.b16 %v55
  %v167 = vunpack.c.l.b16 %v56
  %v168 = vunpack.c.h.b16 %v56
  %v169 = vunpack.c.l.b16 %v57
  %v170 = vpack.c.b16 %v125, %v122
  %v171 = vpack.c.b16 %v126, %v123
  %v172 = vpack.c.b16 %v127, %v124
  %v173 = vpack.c.b16 %v131, %v128
  %v174 = vpack.c.b16 %v132, %v129
  %v175 = vpack.c.b16 %v133, %v130
  %v176 = vpack.c.b16 %v137, %v134
  %v177 = vpack.c.b16 %v138, %v135
  %v178 = vpack.c.b16 %v139, %v136
  %v179 = vpack.c.b16 %v143, %v140
  %v180 = vpack.c.b16 %v144, %v141
  %v181 = vpack.c.b16 %v145, %v142
  %v182 = vpack.c.b16 %v149, %v146
  %v183 = vpack.c.b16 %v150, %v147
  %v184 = vpack.c.b16 %v151, %v148
  %v185 = vpack.c.b16 %v155, %v152
  %v186 = vpack.c.b16 %v156, %v153
  %v187 = vpack.c.b16 %v157, %v154
  %v188 = vpack.c.b16 %v161, %v158
  %v189 = vpack.c.b16 %v162, %v159
  %v190 = vpack.c.b16 %v163, %v160
  %v191 = vpack.c.b16 %v167, %v164
  %v192 = vpack.c.b16 %v168, %v165
  %v193 = vpack.c.b16 %v169, %v166
  %218 = vmatprep.subr.bf16.mxu0 %v171
  %219 = vmatpush1.bf16.msra.mxu0 %v170
  %220 = vmatprep.subr.bf16.mxu0 %v174
  %221 = vmatpush1.bf16.msra.mxu0 %v173
  %222 = vmatprep.subr.bf16.mxu0 %v177
  %223 = vmatpush1.bf16.msra.mxu0 %v176
  %224 = vmatprep.subr.bf16.mxu0 %v180
  %225 = vmatpush1.bf16.msra.mxu0 %v179
  %226 = vmatprep.subr.bf16.mxu0 %v183
  %227 = vmatpush1.bf16.msra.mxu0 %v182
  %228 = vmatprep.subr.bf16.mxu0 %v186
  %229 = vmatpush1.bf16.msra.mxu0 %v185
  %230 = vmatprep.subr.bf16.mxu0 %v189
  %231 = vmatpush1.bf16.msra.mxu0 %v188
  %232 = vmatprep.subr.bf16.mxu0 %v192
  %233 = vmatpush1.bf16.msra.mxu0 %v191
  %234 = vmatprep.subr.bf16.mxu0 0
  %235 = vmatpush1.bf16.msra.mxu0 0
  %236 = vmatprep.subr.bf16.mxu0 0
  %237 = vmatpush1.bf16.msra.mxu0 0
  %238 = vmatprep.subr.bf16.mxu0 0
  %239 = vmatpush1.bf16.msra.mxu0 0
  %240 = vmatprep.subr.bf16.mxu0 0
  %241 = vmatpush1.bf16.msra.mxu0 0
  %242 = vmatprep.subr.bf16.mxu0 0
  %243 = vmatpush1.bf16.msra.mxu0 0
  %244 = vmatprep.subr.bf16.mxu0 0
  %245 = vmatpush1.bf16.msra.mxu0 0
  %246 = vmatprep.subr.bf16.mxu0 0
  %247 = vmatpush1.bf16.msra.mxu0 0
  %248 = vmatprep.subr.bf16.mxu0 0
  %249 = vmatpush1.bf16.msra.mxu0 0
  %250 = vmatprep.mubr.bf16.mxu0 0
  %251 = vmatmul.mubr.bf16.gmra.mrb[0].mxu0 %v86
  %v252 = vpop.f32.mrb[0].mxu0
  %v253 = vadd.f32 %v66, %v252
  %v254 = vpop.f32.mrb[0].mxu0
  %v255 = vadd.f32 %v70, %v254
  %v256 = vpop.f32.mrb[0].mxu0
  %v257 = vadd.f32 %v66, %v256
  %v258 = vpop.f32.mrb[0].mxu0
  %v259 = vadd.f32 %v70, %v258
  %260 = vmatprep.mubr.bf16.mxu0 0
  %261 = vmatmul.mubr.bf16.gmra.mrb[0].mxu0 %v87
  %v262 = vpop.f32.mrb[0].mxu0
  %v263 = vadd.f32 %v66, %v262
  %v264 = vpop.f32.mrb[0].mxu0
  %v265 = vadd.f32 %v70, %v264
  %v266 = vpop.f32.mrb[0].mxu0
  %v267 = vadd.f32 %v66, %v266
  %v268 = vpop.f32.mrb[0].mxu0
  %v269 = vadd.f32 %v70, %v268
  %270 = vdwg.mxu0
  %271 = vmatprep.subr.bf16.mxu0 0
  %272 = vmatpush1.bf16.msra.mxu0 %v172
  %273 = vmatprep.subr.bf16.mxu0 0
  %274 = vmatpush1.bf16.msra.mxu0 %v175
  %275 = vmatprep.subr.bf16.mxu0 0
  %276 = vmatpush1.bf16.msra.mxu0 %v178
  %277 = vmatprep.subr.bf16.mxu0 0
  %278 = vmatpush1.bf16.msra.mxu0 %v181
  %279 = vmatprep.subr.bf16.mxu0 0
  %280 = vmatpush1.bf16.msra.mxu0 %v184
  %281 = vmatprep.subr.bf16.mxu0 0
  %282 = vmatpush1.bf16.msra.mxu0 %v187
  %283 = vmatprep.subr.bf16.mxu0 0
  %284 = vmatpush1.bf16.msra.mxu0 %v190
  %285 = vmatprep.subr.bf16.mxu0 0
  %286 = vmatpush1.bf16.msra.mxu0 %v193
  %287 = vmatprep.subr.bf16.mxu0 0
  %288 = vmatpush1.bf16.msra.mxu0 0
  %289 = vmatprep.subr.bf16.mxu0 0
  %290 = vmatpush1.bf16.msra.mxu0 0
  %291 = vmatprep.subr.bf16.mxu0 0
  %292 = vmatpush1.bf16.msra.mxu0 0
  %293 = vmatprep.subr.bf16.mxu0 0
  %294 = vmatpush1.bf16.msra.mxu0 0
  %295 = vmatprep.subr.bf16.mxu0 0
  %296 = vmatpush1.bf16.msra.mxu0 0
  %297 = vmatprep.subr.bf16.mxu0 0
  %298 = vmatpush1.bf16.msra.mxu0 0
  %299 = vmatprep.subr.bf16.mxu0 0
  %300 = vmatpush1.bf16.msra.mxu0 0
  %301 = vmatprep.subr.bf16.mxu0 0
  %302 = vmatpush1.bf16.msra.mxu0 0
  %303 = vmatprep.mubr.bf16.mxu0 0
  %304 = vmatmul.mubr.bf16.gmra.mrb[0].mxu0 %v86
  %v305 = vpop.f32.mrb[0].mxu0
  %v306 = vadd.f32 %v74, %v305
  %v307 = vpop.f32.mrb[0].mxu0
  %v308 = vpop.f32.mrb[0].mxu0
  %v309 = vadd.f32 %v74, %v308
  %v310 = vpop.f32.mrb[0].mxu0
  %311 = vmatprep.mubr.bf16.mxu0 0
  %312 = vmatmul.mubr.bf16.gmra.mrb[0].mxu0 %v87
  %v313 = vpop.f32.mrb[0].mxu0
  %v314 = vadd.f32 %v74, %v313
  %v315 = vpop.f32.mrb[0].mxu0
  %v316 = vpop.f32.mrb[0].mxu0
  %v317 = vadd.f32 %v74, %v316
  %v318 = vpop.f32.mrb[0].mxu0
  %319 = vdwg.mxu0
  %vm320 = vnez %v59
  %vm321 = vnez %v60
  %vm322 = vnez %v61
  %v323 = vsel %vm320, 16843009, 0
  %v324 = vsel %vm321, 16843009, 0
  %v325 = vsel %vm322, 16843009, 0
  %v326 = vunpack.c.0.s8 %v323
  %v327 = vunpack.c.0.s8 %v324
  %v328 = vunpack.c.0.s8 %v325
  %v329 = vunpack.c.1.s8 %v323
  %v330 = vunpack.c.1.s8 %v324
  %v331 = vunpack.c.1.s8 %v325
  %v332 = vunpack.c.2.s8 %v323
  %v333 = vunpack.c.2.s8 %v324
  %v334 = vunpack.c.2.s8 %v325
  %v335 = vunpack.c.3.s8 %v323
  %v336 = vunpack.c.3.s8 %v324
  %v337 = vunpack.c.3.s8 %v325
  %v338 = vpack.c.b16 %v327, %v326
  %v339 = vpack.c.b16 %v328, %v328
  %v340 = vpack.c.b8 %v339, %v338
  %v341 = vpack.c.b16 %v330, %v329
  %v342 = vpack.c.b16 %v331, %v331
  %v343 = vpack.c.b8 %v342, %v341
  %v344 = vpack.c.b16 %v333, %v332
  %v345 = vpack.c.b16 %v334, %v334
  %v346 = vpack.c.b8 %v345, %v344
  %v347 = vpack.c.b16 %v336, %v335
  %v348 = vpack.c.b16 %v337, %v337
  %v349 = vpack.c.b8 %v348, %v347
  %vm350 = vnez %v340
  %vm351 = vnez %v343
  %vm352 = vnez %v346
  %vm353 = vnez %v349
  %v354 = vsel %vm350, 16843009, 0
  %v355 = vsel %vm351, 16843009, 0
  %v356 = vsel %vm352, 16843009, 0
  %v357 = vsel %vm353, 16843009, 0
  %v358 = vunpack.c.0.s8 %v354
  %v359 = vunpack.c.1.s8 %v354
  %v360 = vunpack.c.2.s8 %v354
  %v361 = vunpack.c.0.s8 %v355
  %v362 = vunpack.c.1.s8 %v355
  %v363 = vunpack.c.2.s8 %v355
  %v364 = vunpack.c.0.s8 %v356
  %v365 = vunpack.c.1.s8 %v356
  %v366 = vunpack.c.2.s8 %v356
  %v367 = vunpack.c.0.s8 %v357
  %v368 = vunpack.c.1.s8 %v357
  %v369 = vunpack.c.2.s8 %v357
  %vm370 = vcmp.ne.s32.totalorder %v358, 0
  %vm371 = vcmp.ne.s32.totalorder %v359, 0
  %vm372 = vcmp.ne.s32.totalorder %v360, 0
  %vm373 = vcmp.ne.s32.totalorder %v361, 0
  %vm374 = vcmp.ne.s32.totalorder %v362, 0
  %vm375 = vcmp.ne.s32.totalorder %v363, 0
  %vm376 = vcmp.ne.s32.totalorder %v364, 0
  %vm377 = vcmp.ne.s32.totalorder %v365, 0
  %vm378 = vcmp.ne.s32.totalorder %v366, 0
  %vm379 = vcmp.ne.s32.totalorder %v367, 0
  %vm380 = vcmp.ne.s32.totalorder %v368, 0
  %vm381 = vcmp.ne.s32.totalorder %v369, 0
  %v382 = vsel %vm370, %v253, -1e+09
  %v383 = vsel %vm371, %v255, -1e+09
  %v384 = vsel %vm372, %v306, -1e+09
  %v385 = vsel %vm373, %v257, -1e+09
  %v386 = vsel %vm374, %v259, -1e+09
  %v387 = vsel %vm375, %v309, -1e+09
  %v388 = vsel %vm376, %v263, -1e+09
  %v389 = vsel %vm377, %v265, -1e+09
  %v390 = vsel %vm378, %v314, -1e+09
  %v391 = vsel %vm379, %v267, -1e+09
  %v392 = vsel %vm380, %v269, -1e+09
  %v393 = vsel %vm381, %v317, -1e+09
  %v394 = vlaneseq
  %v395 = vand.u32 %v394, 127
  %vm396 = vcmp.lt.s32.totalorder %v395, 12
  %397 = vmax.xlane.f32.xlu0 %v382
  %v398 = vpop.xlane.xlu0 %397
  %399 = vmax.xlane.f32.xlu0 %v385
  %v400 = vpop.xlane.xlu0 %399
  %401 = vmax.xlane.f32.xlu0 %v388
  %v402 = vpop.xlane.xlu0 %401
  %403 = vmax.xlane.f32.xlu0 %v391
  %v404 = vpop.xlane.xlu0 %403
  %v405 = vsub.f32 %v382, %v398
  %v406 = vsub.f32 %v385, %v400
  %v407 = vsub.f32 %v388, %v402
  %v408 = vsub.f32 %v391, %v404
  %v409 = vmul.f32 %v405, 1.442695
  %v410 = vpow.pop %v409
  %v411 = vmul.f32 %v406, 1.442695
  %v412 = vpow.pop %v411
  %v413 = vmul.f32 %v407, 1.442695
  %v414 = vpow.pop %v413
  %v415 = vmul.f32 %v408, 1.442695
  %v416 = vpow.pop %v415
  %v417 = vsel %vm396, %v410, 0.0
  %v418 = vsel %vm396, %v412, 0.0
  %v419 = vsel %vm396, %v414, 0.0
  %v420 = vsel %vm396, %v416, 0.0
  %421 = vadd.xlane.f32.xlu0 %v417
  %v422 = vpop.xlane.xlu0 %421
  %423 = vadd.xlane.f32.xlu0 %v418
  %v424 = vpop.xlane.xlu0 %423
  %425 = vadd.xlane.f32.xlu0 %v419
  %v426 = vpop.xlane.xlu0 %425
  %427 = vadd.xlane.f32.xlu0 %v420
  %v428 = vpop.xlane.xlu0 %427
  %v429 = vlog2.pop %v422
  %v430 = vmul.f32 %v429, 0.6931472
  %v431 = vlog2.pop %v424
  %v432 = vmul.f32 %v431, 0.6931472
  %v433 = vlog2.pop %v426
  %v434 = vmul.f32 %v433, 0.6931472
  %v435 = vlog2.pop %v428
  %v436 = vmul.f32 %v435, 0.6931472
  %v437 = vrcp.pop %v422
  %v438 = vrcp.pop %v424
  %v439 = vrcp.pop %v426
  %v440 = vrcp.pop %v428
  %v441 = vsub.f32 0.0, %v430
  %v442 = vsub.f32 0.0, %v432
  %v443 = vsub.f32 0.0, %v434
  %v444 = vsub.f32 0.0, %v436
  %v445 = vmul.f32 %v417, %v405
  %v446 = vmul.f32 %v418, %v406
  %v447 = vmul.f32 %v419, %v407
  %v448 = vmul.f32 %v420, %v408
  %449 = vadd.xlane.f32.xlu0 %v445
  %v450 = vpop.xlane.xlu0 %449
  %451 = vadd.xlane.f32.xlu0 %v446
  %v452 = vpop.xlane.xlu0 %451
  %453 = vadd.xlane.f32.xlu0 %v447
  %v454 = vpop.xlane.xlu0 %453
  %455 = vadd.xlane.f32.xlu0 %v448
  %v456 = vpop.xlane.xlu0 %455
  %v457 = vmul.f32 %v450, %v437
  %v458 = vmul.f32 %v452, %v438
  %v459 = vmul.f32 %v454, %v439
  %v460 = vmul.f32 %v456, %v440
  %v461 = vsub.f32 %v430, %v457
  %v462 = vsub.f32 %v432, %v458
  %v463 = vsub.f32 %v434, %v459
  %v464 = vsub.f32 %v436, %v460
  %vm465 = vcmp.eq.f32.partialorder %v382, %v398
  %vm466 = vcmp.eq.f32.partialorder %v385, %v400
  %vm467 = vcmp.eq.f32.partialorder %v388, %v402
  %vm468 = vcmp.eq.f32.partialorder %v391, %v404
  %vm469 = vmand %vm465, %vm396
  %vm470 = vmand %vm466, %vm396
  %vm471 = vmand %vm467, %vm396
  %vm472 = vmand %vm468, %vm396
  %v473 = vsel %vm469, %v395, 128
  %v474 = vsel %vm470, %v395, 128
  %v475 = vsel %vm471, %v395, 128
  %v476 = vsel %vm472, %v395, 128
  %v477 = vand.u32 %v473, 65535
  %v478 = vshra.s32 %v473, 16
  %v479 = vcvt.s32.f32 %v477
  %v480 = vcvt.s32.f32 %v478
  %481 = vmin.xlane.f32.xlu0 %v480
  %v482 = vpop.xlane.xlu0 %481
  %vm483 = vcmp.eq.f32.partialorder %v480, %v482
  %v484 = vsel %vm483, %v479, inf
  %485 = vmin.xlane.f32.xlu0 %v484
  %v486 = vpop.xlane.xlu0 %485
  %v487 = vcvt.f32.s32 %v486
  %v488 = vcvt.f32.s32 %v482
  %v489 = vshll.u32 %v488, 16
  %v490 = vadd.s32 %v489, %v487
  %v491 = vand.u32 %v474, 65535
  %v492 = vshra.s32 %v474, 16
  %v493 = vcvt.s32.f32 %v491
  %v494 = vcvt.s32.f32 %v492
  %495 = vmin.xlane.f32.xlu0 %v494
  %v496 = vpop.xlane.xlu0 %495
  %vm497 = vcmp.eq.f32.partialorder %v494, %v496
  %v498 = vsel %vm497, %v493, inf
  %499 = vmin.xlane.f32.xlu0 %v498
  %v500 = vpop.xlane.xlu0 %499
  %v501 = vcvt.f32.s32 %v500
  %v502 = vcvt.f32.s32 %v496
  %v503 = vshll.u32 %v502, 16
  %v504 = vadd.s32 %v503, %v501
  %v505 = vand.u32 %v475, 65535
  %v506 = vshra.s32 %v475, 16
  %v507 = vcvt.s32.f32 %v505
  %v508 = vcvt.s32.f32 %v506
  %509 = vmin.xlane.f32.xlu0 %v508
  %v510 = vpop.xlane.xlu0 %509
  %vm511 = vcmp.eq.f32.partialorder %v508, %v510
  %v512 = vsel %vm511, %v507, inf
  %513 = vmin.xlane.f32.xlu0 %v512
  %v514 = vpop.xlane.xlu0 %513
  %v515 = vcvt.f32.s32 %v514
  %v516 = vcvt.f32.s32 %v510
  %v517 = vshll.u32 %v516, 16
  %v518 = vadd.s32 %v517, %v515
  %v519 = vand.u32 %v476, 65535
  %v520 = vshra.s32 %v476, 16
  %v521 = vcvt.s32.f32 %v519
  %v522 = vcvt.s32.f32 %v520
  %523 = vmin.xlane.f32.xlu0 %v522
  %v524 = vpop.xlane.xlu0 %523
  %vm525 = vcmp.eq.f32.partialorder %v522, %v524
  %v526 = vsel %vm525, %v521, inf
  %527 = vmin.xlane.f32.xlu0 %v526
  %v528 = vpop.xlane.xlu0 %527
  %v529 = vcvt.f32.s32 %v528
  %v530 = vcvt.f32.s32 %v524
  %v531 = vshll.u32 %v530, 16
  %v532 = vadd.s32 %v531, %v529
  %vm533 = vcmp.eq.s32.totalorder %v395, 0
  %v534 = vsel %vm533, %v490, 0
  %v535 = vsel %vm533, %v504, 0
  %v536 = vsel %vm533, %v518, 0
  %v537 = vsel %vm533, %v532, 0
  %v538 = vsel %vm533, %v441, 0.0
  %v539 = vsel %vm533, %v442, 0.0
  %v540 = vsel %vm533, %v443, 0.0
  %v541 = vsel %vm533, %v444, 0.0
  %vm542 = vcmp.eq.s32.totalorder %v395, 3
  %v543 = vsel %vm542, %v461, %v538
  %v544 = vsel %vm542, %v462, %v539
  %v545 = vsel %vm542, %v463, %v540
  %v546 = vsel %vm542, %v464, %v541
  %vm547 = vcmp.lt.s32.totalorder %v395, 20
  %548 = vmax.xlane.f32.xlu0 %v383
  %v549 = vpop.xlane.xlu0 %548
  %550 = vmax.xlane.f32.xlu0 %v386
  %v551 = vpop.xlane.xlu0 %550
  %552 = vmax.xlane.f32.xlu0 %v389
  %v553 = vpop.xlane.xlu0 %552
  %554 = vmax.xlane.f32.xlu0 %v392
  %v555 = vpop.xlane.xlu0 %554
  %v556 = vsub.f32 %v383, %v549
  %v557 = vsub.f32 %v386, %v551
  %v558 = vsub.f32 %v389, %v553
  %v559 = vsub.f32 %v392, %v555
  %v560 = vmul.f32 %v556, 1.442695
  %v561 = vpow.pop %v560
  %v562 = vmul.f32 %v557, 1.442695
  %v563 = vpow.pop %v562
  %v564 = vmul.f32 %v558, 1.442695
  %v565 = vpow.pop %v564
  %v566 = vmul.f32 %v559, 1.442695
  %v567 = vpow.pop %v566
  %v568 = vsel %vm547, %v561, 0.0
  %v569 = vsel %vm547, %v563, 0.0
  %v570 = vsel %vm547, %v565, 0.0
  %v571 = vsel %vm547, %v567, 0.0
  %572 = vadd.xlane.f32.xlu0 %v568
  %v573 = vpop.xlane.xlu0 %572
  %574 = vadd.xlane.f32.xlu0 %v569
  %v575 = vpop.xlane.xlu0 %574
  %576 = vadd.xlane.f32.xlu0 %v570
  %v577 = vpop.xlane.xlu0 %576
  %578 = vadd.xlane.f32.xlu0 %v571
  %v579 = vpop.xlane.xlu0 %578
  %v580 = vlog2.pop %v573
  %v581 = vmul.f32 %v580, 0.6931472
  %v582 = vlog2.pop %v575
  %v583 = vmul.f32 %v582, 0.6931472
  %v584 = vlog2.pop %v577
  %v585 = vmul.f32 %v584, 0.6931472
  %v586 = vlog2.pop %v579
  %v587 = vmul.f32 %v586, 0.6931472
  %v588 = vrcp.pop %v573
  %v589 = vrcp.pop %v575
  %v590 = vrcp.pop %v577
  %v591 = vrcp.pop %v579
  %v592 = vsub.f32 0.0, %v581
  %v593 = vsub.f32 0.0, %v583
  %v594 = vsub.f32 0.0, %v585
  %v595 = vsub.f32 0.0, %v587
  %v596 = vmul.f32 %v568, %v556
  %v597 = vmul.f32 %v569, %v557
  %v598 = vmul.f32 %v570, %v558
  %v599 = vmul.f32 %v571, %v559
  %600 = vadd.xlane.f32.xlu0 %v596
  %v601 = vpop.xlane.xlu0 %600
  %602 = vadd.xlane.f32.xlu0 %v597
  %v603 = vpop.xlane.xlu0 %602
  %604 = vadd.xlane.f32.xlu0 %v598
  %v605 = vpop.xlane.xlu0 %604
  %606 = vadd.xlane.f32.xlu0 %v599
  %v607 = vpop.xlane.xlu0 %606
  %v608 = vmul.f32 %v601, %v588
  %v609 = vmul.f32 %v603, %v589
  %v610 = vmul.f32 %v605, %v590
  %v611 = vmul.f32 %v607, %v591
  %v612 = vsub.f32 %v581, %v608
  %v613 = vsub.f32 %v583, %v609
  %v614 = vsub.f32 %v585, %v610
  %v615 = vsub.f32 %v587, %v611
  %vm616 = vcmp.eq.f32.partialorder %v383, %v549
  %vm617 = vcmp.eq.f32.partialorder %v386, %v551
  %vm618 = vcmp.eq.f32.partialorder %v389, %v553
  %vm619 = vcmp.eq.f32.partialorder %v392, %v555
  %vm620 = vmand %vm616, %vm547
  %vm621 = vmand %vm617, %vm547
  %vm622 = vmand %vm618, %vm547
  %vm623 = vmand %vm619, %vm547
  %v624 = vsel %vm620, %v395, 128
  %v625 = vsel %vm621, %v395, 128
  %v626 = vsel %vm622, %v395, 128
  %v627 = vsel %vm623, %v395, 128
  %v628 = vand.u32 %v624, 65535
  %v629 = vshra.s32 %v624, 16
  %v630 = vcvt.s32.f32 %v628
  %v631 = vcvt.s32.f32 %v629
  %632 = vmin.xlane.f32.xlu0 %v631
  %v633 = vpop.xlane.xlu0 %632
  %vm634 = vcmp.eq.f32.partialorder %v631, %v633
  %v635 = vsel %vm634, %v630, inf
  %636 = vmin.xlane.f32.xlu0 %v635
  %v637 = vpop.xlane.xlu0 %636
  %v638 = vcvt.f32.s32 %v637
  %v639 = vcvt.f32.s32 %v633
  %v640 = vshll.u32 %v639, 16
  %v641 = vadd.s32 %v640, %v638
  %v642 = vand.u32 %v625, 65535
  %v643 = vshra.s32 %v625, 16
  %v644 = vcvt.s32.f32 %v642
  %v645 = vcvt.s32.f32 %v643
  %646 = vmin.xlane.f32.xlu0 %v645
  %v647 = vpop.xlane.xlu0 %646
  %vm648 = vcmp.eq.f32.partialorder %v645, %v647
  %v649 = vsel %vm648, %v644, inf
  %650 = vmin.xlane.f32.xlu0 %v649
  %v651 = vpop.xlane.xlu0 %650
  %v652 = vcvt.f32.s32 %v651
  %v653 = vcvt.f32.s32 %v647
  %v654 = vshll.u32 %v653, 16
  %v655 = vadd.s32 %v654, %v652
  %v656 = vand.u32 %v626, 65535
  %v657 = vshra.s32 %v626, 16
  %v658 = vcvt.s32.f32 %v656
  %v659 = vcvt.s32.f32 %v657
  %660 = vmin.xlane.f32.xlu0 %v659
  %v661 = vpop.xlane.xlu0 %660
  %vm662 = vcmp.eq.f32.partialorder %v659, %v661
  %v663 = vsel %vm662, %v658, inf
  %664 = vmin.xlane.f32.xlu0 %v663
  %v665 = vpop.xlane.xlu0 %664
  %v666 = vcvt.f32.s32 %v665
  %v667 = vcvt.f32.s32 %v661
  %v668 = vshll.u32 %v667, 16
  %v669 = vadd.s32 %v668, %v666
  %v670 = vand.u32 %v627, 65535
  %v671 = vshra.s32 %v627, 16
  %v672 = vcvt.s32.f32 %v670
  %v673 = vcvt.s32.f32 %v671
  %674 = vmin.xlane.f32.xlu0 %v673
  %v675 = vpop.xlane.xlu0 %674
  %vm676 = vcmp.eq.f32.partialorder %v673, %v675
  %v677 = vsel %vm676, %v672, inf
  %678 = vmin.xlane.f32.xlu0 %v677
  %v679 = vpop.xlane.xlu0 %678
  %v680 = vcvt.f32.s32 %v679
  %v681 = vcvt.f32.s32 %v675
  %v682 = vshll.u32 %v681, 16
  %v683 = vadd.s32 %v682, %v680
  %vm684 = vcmp.eq.s32.totalorder %v395, 1
  %v685 = vsel %vm684, %v641, %v534
  %v686 = vsel %vm684, %v655, %v535
  %v687 = vsel %vm684, %v669, %v536
  %v688 = vsel %vm684, %v683, %v537
  %v689 = vsel %vm684, %v592, %v543
  %v690 = vsel %vm684, %v593, %v544
  %v691 = vsel %vm684, %v594, %v545
  %v692 = vsel %vm684, %v595, %v546
  %vm693 = vcmp.eq.s32.totalorder %v395, 4
  %v694 = vsel %vm693, %v612, %v689
  %v695 = vsel %vm693, %v613, %v690
  %v696 = vsel %vm693, %v614, %v691
  %v697 = vsel %vm693, %v615, %v692
  %vm698 = vcmp.lt.s32.totalorder %v395, 32
  %699 = vmax.xlane.f32.xlu0 %v384
  %v700 = vpop.xlane.xlu0 %699
  %701 = vmax.xlane.f32.xlu0 %v387
  %v702 = vpop.xlane.xlu0 %701
  %703 = vmax.xlane.f32.xlu0 %v390
  %v704 = vpop.xlane.xlu0 %703
  %705 = vmax.xlane.f32.xlu0 %v393
  %v706 = vpop.xlane.xlu0 %705
  %v707 = vsub.f32 %v384, %v700
  %v708 = vsub.f32 %v387, %v702
  %v709 = vsub.f32 %v390, %v704
  %v710 = vsub.f32 %v393, %v706
  %v711 = vmul.f32 %v707, 1.442695
  %v712 = vpow.pop %v711
  %v713 = vmul.f32 %v708, 1.442695
  %v714 = vpow.pop %v713
  %v715 = vmul.f32 %v709, 1.442695
  %v716 = vpow.pop %v715
  %v717 = vmul.f32 %v710, 1.442695
  %v718 = vpow.pop %v717
  %v719 = vsel %vm698, %v712, 0.0
  %v720 = vsel %vm698, %v714, 0.0
  %v721 = vsel %vm698, %v716, 0.0
  %v722 = vsel %vm698, %v718, 0.0
  %723 = vadd.xlane.f32.xlu0 %v719
  %v724 = vpop.xlane.xlu0 %723
  %725 = vadd.xlane.f32.xlu0 %v720
  %v726 = vpop.xlane.xlu0 %725
  %727 = vadd.xlane.f32.xlu0 %v721
  %v728 = vpop.xlane.xlu0 %727
  %729 = vadd.xlane.f32.xlu0 %v722
  %v730 = vpop.xlane.xlu0 %729
  %v731 = vlog2.pop %v724
  %v732 = vmul.f32 %v731, 0.6931472
  %v733 = vlog2.pop %v726
  %v734 = vmul.f32 %v733, 0.6931472
  %v735 = vlog2.pop %v728
  %v736 = vmul.f32 %v735, 0.6931472
  %v737 = vlog2.pop %v730
  %v738 = vmul.f32 %v737, 0.6931472
  %v739 = vrcp.pop %v724
  %v740 = vrcp.pop %v726
  %v741 = vrcp.pop %v728
  %v742 = vrcp.pop %v730
  %v743 = vsub.f32 0.0, %v732
  %v744 = vsub.f32 0.0, %v734
  %v745 = vsub.f32 0.0, %v736
  %v746 = vsub.f32 0.0, %v738
  %v747 = vmul.f32 %v719, %v707
  %v748 = vmul.f32 %v720, %v708
  %v749 = vmul.f32 %v721, %v709
  %v750 = vmul.f32 %v722, %v710
  %751 = vadd.xlane.f32.xlu0 %v747
  %v752 = vpop.xlane.xlu0 %751
  %753 = vadd.xlane.f32.xlu0 %v748
  %v754 = vpop.xlane.xlu0 %753
  %755 = vadd.xlane.f32.xlu0 %v749
  %v756 = vpop.xlane.xlu0 %755
  %757 = vadd.xlane.f32.xlu0 %v750
  %v758 = vpop.xlane.xlu0 %757
  %v759 = vmul.f32 %v752, %v739
  %v760 = vmul.f32 %v754, %v740
  %v761 = vmul.f32 %v756, %v741
  %v762 = vmul.f32 %v758, %v742
  %v763 = vsub.f32 %v732, %v759
  %v764 = vsub.f32 %v734, %v760
  %v765 = vsub.f32 %v736, %v761
  %v766 = vsub.f32 %v738, %v762
  %vm767 = vcmp.eq.f32.partialorder %v384, %v700
  %vm768 = vcmp.eq.f32.partialorder %v387, %v702
  %vm769 = vcmp.eq.f32.partialorder %v390, %v704
  %vm770 = vcmp.eq.f32.partialorder %v393, %v706
  %vm771 = vmand %vm767, %vm698
  %vm772 = vmand %vm768, %vm698
  %vm773 = vmand %vm769, %vm698
  %vm774 = vmand %vm770, %vm698
  %v775 = vsel %vm771, %v395, 128
  %v776 = vsel %vm772, %v395, 128
  %v777 = vsel %vm773, %v395, 128
  %v778 = vsel %vm774, %v395, 128
  %v779 = vand.u32 %v775, 65535
  %v780 = vshra.s32 %v775, 16
  %v781 = vcvt.s32.f32 %v779
  %v782 = vcvt.s32.f32 %v780
  %783 = vmin.xlane.f32.xlu0 %v782
  %v784 = vpop.xlane.xlu0 %783
  %vm785 = vcmp.eq.f32.partialorder %v782, %v784
  %v786 = vsel %vm785, %v781, inf
  %787 = vmin.xlane.f32.xlu0 %v786
  %v788 = vpop.xlane.xlu0 %787
  %v789 = vcvt.f32.s32 %v788
  %v790 = vcvt.f32.s32 %v784
  %v791 = vshll.u32 %v790, 16
  %v792 = vadd.s32 %v791, %v789
  %v793 = vand.u32 %v776, 65535
  %v794 = vshra.s32 %v776, 16
  %v795 = vcvt.s32.f32 %v793
  %v796 = vcvt.s32.f32 %v794
  %797 = vmin.xlane.f32.xlu0 %v796
  %v798 = vpop.xlane.xlu0 %797
  %vm799 = vcmp.eq.f32.partialorder %v796, %v798
  %v800 = vsel %vm799, %v795, inf
  %801 = vmin.xlane.f32.xlu0 %v800
  %v802 = vpop.xlane.xlu0 %801
  %v803 = vcvt.f32.s32 %v802
  %v804 = vcvt.f32.s32 %v798
  %v805 = vshll.u32 %v804, 16
  %v806 = vadd.s32 %v805, %v803
  %v807 = vand.u32 %v777, 65535
  %v808 = vshra.s32 %v777, 16
  %v809 = vcvt.s32.f32 %v807
  %v810 = vcvt.s32.f32 %v808
  %811 = vmin.xlane.f32.xlu0 %v810
  %v812 = vpop.xlane.xlu0 %811
  %vm813 = vcmp.eq.f32.partialorder %v810, %v812
  %v814 = vsel %vm813, %v809, inf
  %815 = vmin.xlane.f32.xlu0 %v814
  %v816 = vpop.xlane.xlu0 %815
  %v817 = vcvt.f32.s32 %v816
  %v818 = vcvt.f32.s32 %v812
  %v819 = vshll.u32 %v818, 16
  %v820 = vadd.s32 %v819, %v817
  %v821 = vand.u32 %v778, 65535
  %v822 = vshra.s32 %v778, 16
  %v823 = vcvt.s32.f32 %v821
  %v824 = vcvt.s32.f32 %v822
  %825 = vmin.xlane.f32.xlu0 %v824
  %v826 = vpop.xlane.xlu0 %825
  %vm827 = vcmp.eq.f32.partialorder %v824, %v826
  %v828 = vsel %vm827, %v823, inf
  %829 = vmin.xlane.f32.xlu0 %v828
  %v830 = vpop.xlane.xlu0 %829
  %v831 = vcvt.f32.s32 %v830
  %v832 = vcvt.f32.s32 %v826
  %v833 = vshll.u32 %v832, 16
  %v834 = vadd.s32 %v833, %v831
  %vm835 = vcmp.eq.s32.totalorder %v395, 2
  %v836 = vsel %vm835, %v792, %v685
  %v837 = vsel %vm835, %v806, %v686
  %v838 = vsel %vm835, %v820, %v687
  %v839 = vsel %vm835, %v834, %v688
  %v840 = vsel %vm835, %v743, %v694
  %v841 = vsel %vm835, %v744, %v695
  %v842 = vsel %vm835, %v745, %v696
  %v843 = vsel %vm835, %v746, %v697
  %vm844 = vcmp.eq.s32.totalorder %v395, 5
  %v845 = vsel %vm844, %v763, %v840
  %v846 = vsel %vm844, %v764, %v841
  %v847 = vsel %vm844, %v765, %v842
  %v848 = vsel %vm844, %v766, %v843
  %849 = vst [vmem:[%s4] sm:$0xff] %v836
  %850 = vst [vmem:[%s4 + $0x8] sm:$0xff] %v837
  %851 = vst [vmem:[%s4 + $0x10] sm:$0xff] %v838
  %852 = vst [vmem:[%s4 + $0x18] sm:$0xff] %v839
  %853 = vst [vmem:[%s5] sm:$0xff] %v845
  %854 = vst [vmem:[%s5 + $0x8] sm:$0xff] %v846
  %855 = vst [vmem:[%s5 + $0x10] sm:$0xff] %v847
  %856 = vst [vmem:[%s5 + $0x18] sm:$0xff] %v848
  // Predicated region
  $region18: #{_impl.1} parent=0 // pred_check
    _
  $region19: #{_impl.1} parent=0 // pred_check_branch
    %858 = sbr.rel (0) target = $region21
  $region20: #{_impl.1} parent=0 // pred_region
    _
  $region21: #{_impl.1} parent=0 // pred_fallthru
    _
  // Predicated region
  $region22: #{_impl.1} parent=0 // pred_check
    _
  $region23: #{_impl.1} parent=0 // pred_check_branch
    %860 = sbr.rel (0) target = $region25
  $region24: #{_impl.1} parent=0 // pred_region
    _
  $region25: #{_impl.1} parent=0 // pred_fallthru
    _
  // Predicated region
  $region26: #{_impl.1} parent=0 // pred_check
    _
  $region27: #{_impl.1} parent=0 // pred_check_branch
    %862 = sbr.rel (0) target = $region29
  $region28: #{_impl.1} parent=0 // pred_region
    _
  $region29: #{_impl.1} parent=0 // pred_fallthru
    _
  // Predicated region
  $region30: #{_impl.1} parent=0 // pred_check
    _
  $region31: #{_impl.1} parent=0 // pred_check_branch
    %864 = sbr.rel (0) target = $region33
  $region32: #{_impl.1} parent=0 // pred_region
    _
  $region33: #{_impl.1} parent=0 // pred_fallthru
    _

</llo_original>
